<compile_context>
chip_gen: v5e
topology: v5e:2x2
jax: 0.10.0
libtpu: 0.0.40
codegen_flags: <defaults>
</compile_context>

<pallas_src>
import jax
import jax.numpy as jnp
from jax.experimental import pallas as pl
from jax.experimental.pallas import tpu as pltpu

LANE = 128
SUBLANE = 8


def _round_up(x, m):
    return ((x + m - 1) // m) * m


def _pad2d(a, rows, cols):
    r, c = a.shape
    return jnp.pad(a, ((0, rows - r), (0, cols - c)))


def _vmem_budget_bytes():
    """Per-generation VMEM budget derived from the chip."""
    phys = 64 * 1024 * 1024
    try:
        info = pltpu.get_tpu_info()
        phys = getattr(info, "vmem_capacity_bytes", phys) or phys
    except Exception:
        pass
    if phys >= 128 * 1024 * 1024:
        return 96 * 1024 * 1024            # v5e / v6e: 128 MiB physical
    return int(phys * 0.55)                # v7x: leave headroom for Mosaic scratch


# ----------------------------------------------------------------------------
# Fully fused forward (small / mid graphs): one pallas_call, adjacency resident
# in VMEM across BOTH layers.  (Single invocation -> no megacore split; for
# graphs in this size class launch overhead / HBM traffic dominate anyway.)
# ----------------------------------------------------------------------------
def _fused_forward_kernel(adj_ref, x_ref, w1_ref, b1_ref, w2_ref, b2_ref, o_ref):
    adj = adj_ref[...]
    m1 = jnp.dot(x_ref[...], w1_ref[...],
                 preferred_element_type=jnp.float32).astype(jnp.bfloat16)
    h1 = jnp.maximum(
        jnp.dot(adj, m1, preferred_element_type=jnp.float32) + b1_ref[...], 0.0)
    m2 = jnp.dot(h1.astype(jnp.bfloat16), w2_ref[...],
                 preferred_element_type=jnp.float32).astype(jnp.bfloat16)
    h2 = jnp.maximum(
        jnp.dot(adj, m2, preferred_element_type=jnp.float32) + b2_ref[...], 0.0)
    o_ref[...] = jnp.maximum(h1, h2).astype(o_ref.dtype)


def _fused_forward(adj_p, x_p, w1_p, b1_p, w2_p, b2_p, vmem_limit):
    n_pad = adj_p.shape[0]
    h_pad = w1_p.shape[1]
    return pl.pallas_call(
        _fused_forward_kernel,
        out_shape=jax.ShapeDtypeStruct((n_pad, h_pad), jnp.float32),
        compiler_params=pltpu.CompilerParams(vmem_limit_bytes=vmem_limit),
    )(adj_p, x_p, w1_p, b1_p, w2_p, b2_p)


# ----------------------------------------------------------------------------
# Streaming path kernels (large graphs)
# ----------------------------------------------------------------------------
def _xw_kernel(x_ref, w_ref, o_ref):
    o_ref[...] = jnp.dot(x_ref[...], w_ref[...],
                         preferred_element_type=jnp.float32).astype(o_ref.dtype)


def _dense_transform(x, w, tm, vmem_limit):
    """Row-tiled dense feature transform M = X @ W (bf16 out, f32 acc)."""
    n_pad, f_pad = x.shape
    h_pad = w.shape[1]
    return pl.pallas_call(
        _xw_kernel,
        out_shape=jax.ShapeDtypeStruct((n_pad, h_pad), jnp.bfloat16),
        grid=(n_pad // tm,),
        in_specs=[
            pl.BlockSpec((tm, f_pad), lambda i: (i, 0)),
            pl.BlockSpec((f_pad, h_pad), lambda i: (0, 0)),
        ],
        out_specs=pl.BlockSpec((tm, h_pad), lambda i: (i, 0)),
        compiler_params=pltpu.CompilerParams(
            dimension_semantics=("parallel",),
            vmem_limit_bytes=vmem_limit),
    )(x, w)


def _make_layer1_kernel(tk, msg_resident):
    """h1 = relu(A @ msg + b1);  m2 = h1 @ W2   (fused into the epilogue)."""
    def kernel(adj_ref, msg_ref, b_ref, w2_ref, h1_ref, m2_ref, acc_ref):
        k = pl.program_id(1)

        @pl.when(k == 0)
        def _():
            acc_ref[...] = jnp.zeros_like(acc_ref)

        if msg_resident:
            off = pl.multiple_of(k * tk, tk)
            msg = msg_ref[pl.ds(off, tk), :]
        else:
            msg = msg_ref[...]
        acc_ref[...] += jnp.dot(adj_ref[...], msg,
                                preferred_element_type=jnp.float32)

        @pl.when(k == pl.num_programs(1) - 1)
        def _():
            h1 = jnp.maximum(acc_ref[...] + b_ref[...], 0.0)
            h1_ref[...] = h1.astype(h1_ref.dtype)
            m2_ref[...] = jnp.dot(
                h1.astype(jnp.bfloat16), w2_ref[...],
                preferred_element_type=jnp.float32).astype(m2_ref.dtype)
    return kernel


def _make_layer2_kernel(tk, msg_resident):
    """out = max(relu(A @ msg + b2), h1)   (JumpingKnowledge max fused)."""
    def kernel(adj_ref, msg_ref, b_ref, skip_ref, o_ref, acc_ref):
        k = pl.program_id(1)

        @pl.when(k == 0)
        def _():
            acc_ref[...] = jnp.zeros_like(acc_ref)

        if msg_resident:
            off = pl.multiple_of(k * tk, tk)
            msg = msg_ref[pl.ds(off, tk), :]
        else:
            msg = msg_ref[...]
        acc_ref[...] += jnp.dot(adj_ref[...], msg,
                                preferred_element_type=jnp.float32)

        @pl.when(k == pl.num_programs(1) - 1)
        def _():
            h2 = jnp.maximum(acc_ref[...] + b_ref[...], 0.0)
            o_ref[...] = jnp.maximum(
                h2, skip_ref[...].astype(jnp.float32)).astype(o_ref.dtype)
    return kernel


def _spmm_layer(kernel, adj_p, msg, fixed_inputs, fixed_specs, out_shapes,
                out_specs, tm, tk, msg_resident, vmem_limit):
    n_pad = adj_p.shape[0]
    h_pad = msg.shape[1]
    grid = (n_pad // tm, n_pad // tk)
    if msg_resident:
        # Whole message matrix resident in VMEM (constant block index -> the
        # DMA happens once; no re-streaming per row tile).
        msg_spec = pl.BlockSpec((n_pad, h_pad), lambda i, k: (0, 0))
    else:
        msg_spec = pl.BlockSpec((tk, h_pad), lambda i, k: (k, 0))
    # NOTE: pipeline_mode=pl.Buffered(3) on the adjacency spec is an optional
    # few-% win once tiles are this large; omitted to keep VMEM headroom.
    in_specs = [pl.BlockSpec((tm, tk), lambda i, k: (i, k)), msg_spec] + fixed_specs
    return pl.pallas_call(
        kernel,
        out_shape=out_shapes,
        grid=grid,
        in_specs=in_specs,
        out_specs=out_specs,
        scratch_shapes=[pltpu.VMEM((tm, h_pad), jnp.float32)],
        compiler_params=pltpu.CompilerParams(
            dimension_semantics=("parallel", "arbitrary"),
            vmem_limit_bytes=vmem_limit),
    )(adj_p, msg, *fixed_inputs)


def _stream_tiles(n):
    """Padded node count, row tile (>=2 tiles for v7x dual-TC), reduction tile."""
    n8 = _round_up(max(n, SUBLANE), SUBLANE)
    tm = 512
    n_pad = _round_up(n8, tm)
    if n_pad % 2048 == 0:
        tk = 2048
    elif n_pad % 1024 == 0:
        tk = 1024
    else:
        tk = 512
    return n_pad, tm, tk


def _streamed_forward(adj_p, x_p, w1_p, b1_p, w2_p, b2_p, tm, tk, budget):
    n_pad = adj_p.shape[0]
    f_pad = x_p.shape[1]
    h_pad = w1_p.shape[1]

    # X @ W1 with a large row tile (>=1024 rows when it divides and fits).
    tm_x = tm
    for cand in (2048, 1024):
        if n_pad % cand == 0 and 2 * cand * f_pad * 2 <= budget // 3:
            tm_x = cand
            break
    xw1 = _dense_transform(x_p, w1_p, tm_x, budget)

    # Keep the (N, H) bf16 message matrix fully VMEM-resident when it fits.
    msg_resident = 2 * (n_pad * h_pad * 2) <= budget // 4

    bias_spec = pl.BlockSpec((1, h_pad), lambda i, k: (0, 0))
    row_spec = pl.BlockSpec((tm, h_pad), lambda i, k: (i, 0))

    # Layer 1: h1 = relu(A @ (X W1) + b1), plus fused m2 = h1 @ W2.
    h1, m2 = _spmm_layer(
        _make_layer1_kernel(tk, msg_resident), adj_p, xw1,
        fixed_inputs=[b1_p, w2_p],
        fixed_specs=[bias_spec, pl.BlockSpec((h_pad, h_pad), lambda i, k: (0, 0))],
        out_shapes=(jax.ShapeDtypeStruct((n_pad, h_pad), jnp.bfloat16),
                    jax.ShapeDtypeStruct((n_pad, h_pad), jnp.bfloat16)),
        out_specs=(row_spec, row_spec),
        tm=tm, tk=tk, msg_resident=msg_resident, vmem_limit=budget)

    # Layer 2: out = max(relu(A @ m2 + b2), h1)   (JK max).
    out = _spmm_layer(
        _make_layer2_kernel(tk, msg_resident), adj_p, m2,
        fixed_inputs=[b2_p, h1],
        fixed_specs=[bias_spec, row_spec],
        out_shapes=jax.ShapeDtypeStruct((n_pad, h_pad), jnp.float32),
        out_specs=row_spec,
        tm=tm, tk=tk, msg_resident=msg_resident, vmem_limit=budget)
    return out


# ----------------------------------------------------------------------------
# Full JK forward:
#   h1 = relu(A (X W1) + b1); h2 = relu(A (h1 W2) + b2); out = max(h1, h2)
# ----------------------------------------------------------------------------
def jk_forward(adj_norm, x, w1, b1, w2, b2, force_stream=False):
    n, f = x.shape
    h = w1.shape[1]
    f_pad = _round_up(f, LANE)
    h_pad = _round_up(h, LANE)
    budget = _vmem_budget_bytes()

    # Fully fused path when adjacency + features + f32 intermediates fit VMEM.
    n8 = _round_up(max(n, SUBLANE), SUBLANE)
    fused_bytes = (2 * n8 * n8                       # adjacency (bf16)
                   + 2 * n8 * f_pad                  # features (bf16)
                   + 2 * (f_pad + h_pad) * h_pad     # weights (bf16)
                   + 8 * 4 * n8 * h_pad)             # f32 intermediates
    if (not force_stream) and fused_bytes <= budget:
        adj_p = _pad2d(adj_norm, n8, n8).astype(jnp.bfloat16)
        x_p = _pad2d(x, n8, f_pad).astype(jnp.bfloat16)
        w1_p = _pad2d(w1, f_pad, h_pad).astype(jnp.bfloat16)
        w2_p = _pad2d(w2, h_pad, h_pad).astype(jnp.bfloat16)
        b1_p = _pad2d(b1, 1, h_pad).astype(jnp.float32)
        b2_p = _pad2d(b2, 1, h_pad).astype(jnp.float32)
        out = _fused_forward(adj_p, x_p, w1_p, b1_p, w2_p, b2_p, budget)
        return out[:n, :h]

    # Streaming tiled path (large graphs).
    n_pad, tm, tk = _stream_tiles(n)
    adj_p = _pad2d(adj_norm, n_pad, n_pad).astype(jnp.bfloat16)
    x_p = _pad2d(x, n_pad, f_pad).astype(jnp.bfloat16)
    w1_p = _pad2d(w1, f_pad, h_pad).astype(jnp.bfloat16)
    w2_p = _pad2d(w2, h_pad, h_pad).astype(jnp.bfloat16)
    b1_p = _pad2d(b1, 1, h_pad).astype(jnp.float32)
    b2_p = _pad2d(b2, 1, h_pad).astype(jnp.float32)
    out = _streamed_forward(adj_p, x_p, w1_p, b1_p, w2_p, b2_p, tm, tk, budget)
    return out[:n, :h]


# ----------------------------------------------------------------------------
# Plain-JAX glue: GCN symmetric normalization, spectral norm, param init
# ----------------------------------------------------------------------------
def gcn_norm_adj(edge_index, num_nodes):
    """Dense D^{-1/2} (A + I) D^{-1/2}; scatter-ADD matches PyG GCNConv."""
    # TODO(synk): for genuinely large sparse graphs, replace the dense adjacency
    # with a block-sparse spmm (scalar-prefetched nonzero K-block lists via
    # PrefetchScalarGridSpec + data-dependent index_map) so zero tiles are
    # never DMA'd.
    src, dst = edge_index[0], edge_index[1]
    adj = jnp.zeros((num_nodes, num_nodes), jnp.float32)
    adj = adj.at[dst, src].add(1.0)
    adj = adj + jnp.eye(num_nodes, dtype=jnp.float32)
    deg = adj.sum(axis=1)
    dinv = jnp.where(deg > 0, 1.0 / jnp.sqrt(deg), 0.0)
    return dinv[:, None] * adj * dinv[None, :]


def spectral_normalize(w, n_iter=30):
    """Deterministic power-iteration spectral norm (mimics nn.utils.spectral_norm)."""
    u = jnp.ones((w.shape[0],), jnp.float32) / jnp.sqrt(w.shape[0])
    v = None
    for _ in range(n_iter):
        v = w.T @ u
        v = v / (jnp.linalg.norm(v) + 1e-12)
        u = w @ v
        u = u / (jnp.linalg.norm(u) + 1e-12)
    sigma = u @ (w @ v)
    return w / sigma


def xavier_uniform(key, fan_in, fan_out):
    limit = jnp.sqrt(6.0 / (fan_in + fan_out))
    return jax.random.uniform(key, (fan_in, fan_out), jnp.float32, -limit, limit)


def graphcf_forward(x, edge_index, w1, b1, w2, b2, index=None):
    """GraphCF.forward: return encoder hidden states (or hidden[index])."""
    adj_norm = gcn_norm_adj(edge_index, x.shape[0])
    hidden = jk_forward(adj_norm, x, w1, b1, w2, b2)
    if index is None:
        return hidden
    return hidden[index]


def jk_forward_ref(adj, x, w1, b1, w2, b2):
    h1 = jnp.maximum(adj @ (x @ w1) + b1, 0.0)
    h2 = jnp.maximum(adj @ (h1 @ w2) + b2, 0.0)
    return jnp.maximum(h1, h2)


# ----------------------------------------------------------------------------
if __name__ == "__main__":
    key = jax.random.PRNGKey(0)
    k_x, k_w1, k_w2, k_x2 = jax.random.split(key, 4)

    N, NFEAT, NHID = 8, 16, 32

    # Parameters (xavier-uniform weights, zero bias), then spectral norm.
    w1 = spectral_normalize(xavier_uniform(k_w1, NFEAT, NHID))
    w2 = spectral_normalize(xavier_uniform(k_w2, NHID, NHID))
    b1 = jnp.zeros((1, NHID), jnp.float32)
    b2 = jnp.zeros((1, NHID), jnp.float32)

    # ---- Test 1: tiny ring graph -> fully fused single-kernel path ----------
    x = jax.random.normal(k_x, (N, NFEAT), jnp.float32)
    src = jnp.array([0, 1, 1, 2, 2, 3, 3, 4, 4, 5, 5, 6, 6, 7, 7, 0], jnp.int32)
    dst = jnp.array([1, 0, 2, 1, 3, 2, 4, 3, 5, 4, 6, 5, 7, 6, 0, 7], jnp.int32)
    edge_index = jnp.stack([src, dst], axis=0)

    out = graphcf_forward(x, edge_index, w1, b1, w2, b2)
    jax.block_until_ready(out)
    assert out.shape == (N, NHID) and out.dtype == jnp.float32

    adj_norm = gcn_norm_adj(edge_index, N)
    ref = jk_forward_ref(adj_norm, x, w1, b1, w2, b2)
    assert bool(jnp.all(jnp.isfinite(out)))
    assert bool(jnp.allclose(out, ref, rtol=5e-2, atol=5e-2))

    # forward(index=...) path of GraphCF: gather selected node embeddings.
    idx = jnp.array([1, 5], jnp.int32)
    z = graphcf_forward(x, edge_index, w1, b1, w2, b2, index=idx)
    assert z.shape == (2, NHID)

    # ---- Test 2: medium ring graph -> streaming tiled path (2 row tiles) ----
    N2 = 600
    x2 = jax.random.normal(k_x2, (N2, NFEAT), jnp.float32)
    ids = jnp.arange(N2, dtype=jnp.int32)
    src2 = jnp.concatenate([ids, (ids + 1) % N2])
    dst2 = jnp.concatenate([(ids + 1) % N2, ids])
    adj2 = gcn_norm_adj(jnp.stack([src2, dst2], axis=0), N2)

    out2 = jk_forward(adj2, x2, w1, b1, w2, b2, force_stream=True)
    jax.block_until_ready(out2)
    assert out2.shape == (N2, NHID) and out2.dtype == jnp.float32
    ref2 = jk_forward_ref(adj2, x2, w1, b1, w2, b2)
    assert bool(jnp.all(jnp.isfinite(out2)))
    assert bool(jnp.allclose(out2, ref2, rtol=5e-2, atol=5e-2))

    print("KERNEL_OK")
</pallas_src>

<mosaic_0001>
module attributes {stable_mosaic.version = 11 : i64} {
  func.func @_fused_forward_kernel(%arg0: memref<8x8xbf16, #tpu.memory_space<vmem>>, %arg1: memref<8x128xbf16, #tpu.memory_space<vmem>>, %arg2: memref<128x128xbf16, #tpu.memory_space<vmem>>, %arg3: memref<1x128xf32, #tpu.memory_space<vmem>>, %arg4: memref<128x128xbf16, #tpu.memory_space<vmem>>, %arg5: memref<1x128xf32, #tpu.memory_space<vmem>>, %arg6: memref<8x128xf32, #tpu.memory_space<vmem>>) attributes {dimension_semantics = [], scalar_prefetch = 0 : i64, scratch_operands = 0 : i64, tpu.core_type = #tpu.core_type<tc>} {
    %c0 = arith.constant 0 : index
    %c0_0 = arith.constant 0 : index
    %0 = vector.load %arg0[%c0, %c0_0] : memref<8x8xbf16, #tpu.memory_space<vmem>>, vector<8x8xbf16>
    %c0_1 = arith.constant 0 : index
    %c0_2 = arith.constant 0 : index
    %1 = vector.load %arg1[%c0_1, %c0_2] : memref<8x128xbf16, #tpu.memory_space<vmem>>, vector<8x128xbf16>
    %c0_3 = arith.constant 0 : index
    %c0_4 = arith.constant 0 : index
    %2 = vector.load %arg2[%c0_3, %c0_4] : memref<128x128xbf16, #tpu.memory_space<vmem>>, vector<128x128xbf16>
    %cst = arith.constant dense<0.000000e+00> : vector<8x128xf32>
    %3 = tpu.matmul %1, %2, %cst {dimension_numbers = #tpu.dot_dimension_numbers<[1], [0], [0], [1], [0, 0, 1, 1], [], []>} : vector<8x128xbf16>, vector<128x128xbf16>, vector<8x128xf32> -> vector<8x128xf32>
    %4 = arith.truncf %3 : vector<8x128xf32> to vector<8x128xbf16>
    %cst_5 = arith.constant dense<0.000000e+00> : vector<8x128xf32>
    %5 = tpu.matmul %0, %4, %cst_5 {dimension_numbers = #tpu.dot_dimension_numbers<[1], [0], [0], [1], [0, 0, 1, 1], [], []>} : vector<8x8xbf16>, vector<8x128xbf16>, vector<8x128xf32> -> vector<8x128xf32>
    %c0_6 = arith.constant 0 : index
    %c0_7 = arith.constant 0 : index
    %6 = vector.load %arg3[%c0_6, %c0_7] : memref<1x128xf32, #tpu.memory_space<vmem>>, vector<1x128xf32>
    %7 = vector.broadcast %6 : vector<1x128xf32> to vector<8x128xf32>
    %8 = arith.addf %5, %7 : vector<8x128xf32>
    %cst_8 = arith.constant 0.000000e+00 : f32
    %9 = vector.broadcast %cst_8 : f32 to vector<8x128xf32>
    %10 = arith.maximumf %8, %9 : vector<8x128xf32>
    %11 = arith.truncf %10 : vector<8x128xf32> to vector<8x128xbf16>
    %c0_9 = arith.constant 0 : index
    %c0_10 = arith.constant 0 : index
    %12 = vector.load %arg4[%c0_9, %c0_10] : memref<128x128xbf16, #tpu.memory_space<vmem>>, vector<128x128xbf16>
    %cst_11 = arith.constant dense<0.000000e+00> : vector<8x128xf32>
    %13 = tpu.matmul %11, %12, %cst_11 {dimension_numbers = #tpu.dot_dimension_numbers<[1], [0], [0], [1], [0, 0, 1, 1], [], []>} : vector<8x128xbf16>, vector<128x128xbf16>, vector<8x128xf32> -> vector<8x128xf32>
    %14 = arith.truncf %13 : vector<8x128xf32> to vector<8x128xbf16>
    %cst_12 = arith.constant dense<0.000000e+00> : vector<8x128xf32>
    %15 = tpu.matmul %0, %14, %cst_12 {dimension_numbers = #tpu.dot_dimension_numbers<[1], [0], [0], [1], [0, 0, 1, 1], [], []>} : vector<8x8xbf16>, vector<8x128xbf16>, vector<8x128xf32> -> vector<8x128xf32>
    %c0_13 = arith.constant 0 : index
    %c0_14 = arith.constant 0 : index
    %16 = vector.load %arg5[%c0_13, %c0_14] : memref<1x128xf32, #tpu.memory_space<vmem>>, vector<1x128xf32>
    %17 = vector.broadcast %16 : vector<1x128xf32> to vector<8x128xf32>
    %18 = arith.addf %15, %17 : vector<8x128xf32>
    %cst_15 = arith.constant 0.000000e+00 : f32
    %19 = vector.broadcast %cst_15 : f32 to vector<8x128xf32>
    %20 = arith.maximumf %18, %19 : vector<8x128xf32>
    %21 = arith.maximumf %10, %20 : vector<8x128xf32>
    %c0_16 = arith.constant 0 : index
    %c0_17 = arith.constant 0 : index
    %22 = vector.load %arg6[%c0_16, %c0_17] : memref<8x128xf32, #tpu.memory_space<vmem>>, vector<8x128xf32>
    tpu.vector_store %arg6[%c0_16, %c0_17], %21 {strides = array<i32>} : memref<8x128xf32, #tpu.memory_space<vmem>>, vector<8x128xf32>,
    return
  }
}

</mosaic_0001>

<llo_original>
// kernel: tpu_custom_call.1
$region0: #{tpu_custom_call.1}
  #allocation0 [shape = 'u32[]', space=smem, size = 0x4, offset = 0x4, fixed_abs, tag = 'smem constant byte address 0x4 - core index']
  #allocation1 [shape = 'u32[72,128]{1,0:T(1,128)}', space=vmem, size = 0x9000, scoped, tag = 'internal scratch']
  %s0 = inlined_call_operand.hbm [shape: bf16[8,8], index: 0, kind: input, shape index: {}]
  %s1 = inlined_call_operand.hbm [shape: bf16[8,128], index: 1, kind: input, shape index: {}]
  %s2 = inlined_call_operand.hbm [shape: bf16[128,128], index: 2, kind: input, shape index: {}]
  %s3 = inlined_call_operand.vmem [shape: f32[1,128], index: 3, kind: input, shape index: {}]
  %s4 = inlined_call_operand.hbm [shape: bf16[128,128], index: 4, kind: input, shape index: {}]
  %s5 = inlined_call_operand.vmem [shape: f32[1,128], index: 5, kind: input, shape index: {}]
  %s6 = inlined_call_operand.hbm [shape: f32[8,128], index: 6, kind: output, shape index: {}]
  %s7 = sld [smem:[#allocation0]]
  $region50: #{tpu_custom_call.1} parent=0
    _
  %s9 = ssub.s32 1, %s7
  %s10 = scalar_select 0, %s9, %s7
  $region1: #{tpu_custom_call.1} parent=0
    #allocation2 [shape = 'u8[2048]{0}', space=vmem, size = 0x800, scoped, tag = 'input window, operand 0, single buffered']
    #allocation3 [shape = 's32[1]{0}', space=sflag, size = 0x4, scoped, tag = 'scoped memory for tpu_custom_call.1']
    #allocation4 [shape = 's32[1]{0}', space=sflag, size = 0x4, scoped, tag = 'scoped memory for tpu_custom_call.1']
    #allocation5 [shape = 'u8[2048]{0}', space=vmem, size = 0x800, scoped, tag = 'input window, operand 1, single buffered']
    #allocation6 [shape = 's32[1]{0}', space=sflag, size = 0x4, scoped, tag = 'scoped memory for tpu_custom_call.1']
    #allocation7 [shape = 'u8[32768]{0}', space=vmem, size = 0x8000, scoped, tag = 'input window, operand 2, single buffered']
    #allocation8 [shape = 'u8[32768]{0}', space=vmem, size = 0x8000, scoped, tag = 'input window, operand 4, single buffered']
    #allocation9 [shape = 's32[1]{0}', space=sflag, size = 0x4, scoped, tag = 'scoped memory for tpu_custom_call.1']
    #allocation10 [shape = 'u8[4096]{0}', space=vmem, size = 0x1000, scoped, tag = 'output window, operand 0, single buffered']
    %11 = vsyncpa [#allocation3], 0
    %12 = vsyncpa [#allocation6], 0
    %13 = vsyncpa [#allocation9], 0
    %14 = vsyncpa [#allocation4], 0
    // Predicated region
    $region2: #{tpu_custom_call.1} parent=1 // pred_check
      _
    $region3: #{tpu_custom_call.1} parent=1 // pred_check_branch
      %16 = sbr.rel (0) target = $region5
    $region4: #{tpu_custom_call.1} parent=1 // pred_region
      %18 = vsyncadd [#allocation3], 0
      %s20 = sshll.u32 %s0, 4
      %s21 = int_to_ptr.hbm [resolvable:$true] %s20
      %s22 = sshll.u32 [#allocation2], 4
      %s23 = int_to_ptr.vmem [resolvable:$true] %s22
      %25 = dma.hbm_to_vmem [thread:$0]  %s21, 64, %s23, [#allocation3]
    $region5: #{tpu_custom_call.1} parent=1 // pred_fallthru
      _
    // Predicated region
    $region6: #{tpu_custom_call.1} parent=1 // pred_check
      _
    $region7: #{tpu_custom_call.1} parent=1 // pred_check_branch
      %27 = sbr.rel (0) target = $region9
    $region8: #{tpu_custom_call.1} parent=1 // pred_region
      %29 = vsyncadd [#allocation6], 0
      %s31 = sshll.u32 %s1, 4
      %s32 = int_to_ptr.hbm [resolvable:$true] %s31
      %s33 = sshll.u32 [#allocation5], 4
      %s34 = int_to_ptr.vmem [resolvable:$true] %s33
      %36 = dma.hbm_to_vmem [thread:$0]  %s32, 64, %s34, [#allocation6]
    $region9: #{tpu_custom_call.1} parent=1 // pred_fallthru
      _
    // Predicated region
    $region10: #{tpu_custom_call.1} parent=1 // pred_check
      _
    $region11: #{tpu_custom_call.1} parent=1 // pred_check_branch
      %38 = sbr.rel (0) target = $region13
    $region12: #{tpu_custom_call.1} parent=1 // pred_region
      %40 = vsyncadd [#allocation6], 0
      %s41 = sshll.u32 %s2, 4
      %s42 = int_to_ptr.hbm [resolvable:$true] %s41
      %s43 = sshll.u32 [#allocation7], 4
      %s44 = int_to_ptr.vmem [resolvable:$true] %s43
      %49 = dma.hbm_to_vmem [thread:$0]  %s42, 1024, %s44, [#allocation6], 64, 64, 4
    $region13: #{tpu_custom_call.1} parent=1 // pred_fallthru
      _
    // Predicated region
    $region14: #{tpu_custom_call.1} parent=1 // pred_check
      _
    $region15: #{tpu_custom_call.1} parent=1 // pred_check_branch
      %51 = sbr.rel (0) target = $region17
    $region16: #{tpu_custom_call.1} parent=1 // pred_region
      _
    $region17: #{tpu_custom_call.1} parent=1 // pred_fallthru
      _
    // Predicated region
    $region18: #{tpu_custom_call.1} parent=1 // pred_check
      _
    $region19: #{tpu_custom_call.1} parent=1 // pred_check_branch
      %53 = sbr.rel (0) target = $region21
    $region20: #{tpu_custom_call.1} parent=1 // pred_region
      %55 = vsyncadd [#allocation9], 0
      %s56 = sshll.u32 %s4, 4
      %s57 = int_to_ptr.hbm [resolvable:$true] %s56
      %s58 = sshll.u32 [#allocation8], 4
      %s59 = int_to_ptr.vmem [resolvable:$true] %s58
      %64 = dma.hbm_to_vmem [thread:$0]  %s57, 1024, %s59, [#allocation9], 64, 64, 4
    $region21: #{tpu_custom_call.1} parent=1 // pred_fallthru
      _
    // Predicated region
    $region22: #{tpu_custom_call.1} parent=1 // pred_check
      _
    $region23: #{tpu_custom_call.1} parent=1 // pred_check_branch
      %66 = sbr.rel (0) target = $region25
    $region24: #{tpu_custom_call.1} parent=1 // pred_region
      _
    $region25: #{tpu_custom_call.1} parent=1 // pred_fallthru
      _
    // Predicated region
    $region26: #{tpu_custom_call.1} parent=1 // pred_check
      _
    $region27: #{tpu_custom_call.1} parent=1 // pred_check_branch
      %68 = sbr.rel (0) target = $region29
    $region28: #{tpu_custom_call.1} parent=1 // pred_region
      %70 = dma.done [#allocation3], 64
    $region29: #{tpu_custom_call.1} parent=1 // pred_fallthru
      _
    // Predicated region
    $region30: #{tpu_custom_call.1} parent=1 // pred_check
      _
    $region31: #{tpu_custom_call.1} parent=1 // pred_check_branch
      %72 = sbr.rel (0) target = $region33
    $region32: #{tpu_custom_call.1} parent=1 // pred_region
      %74 = dma.done [#allocation6], 64
    $region33: #{tpu_custom_call.1} parent=1 // pred_fallthru
      _
    // Predicated region
    $region34: #{tpu_custom_call.1} parent=1 // pred_check
      _
    $region35: #{tpu_custom_call.1} parent=1 // pred_check_branch
      %76 = sbr.rel (0) target = $region37
    $region36: #{tpu_custom_call.1} parent=1 // pred_region
      %78 = dma.done [#allocation6], 1024
    $region37: #{tpu_custom_call.1} parent=1 // pred_fallthru
      _
    // Predicated region
    $region38: #{tpu_custom_call.1} parent=1 // pred_check
      _
    $region39: #{tpu_custom_call.1} parent=1 // pred_check_branch
      %80 = sbr.rel (0) target = $region41
    $region40: #{tpu_custom_call.1} parent=1 // pred_region
      %82 = dma.done [#allocation9], 1024
    $region41: #{tpu_custom_call.1} parent=1 // pred_fallthru
      _
    %v84 = vld [vmem:[#allocation2] sm:$0xf]
    %v85 = vld [vmem:[#allocation5] sm:$0xf]
    %v86 = vld [vmem:[#allocation7] sm:$0xf]
    %v87 = vld [vmem:[#allocation7 + $0x4] sm:$0xf]
    %v88 = vld [vmem:[#allocation7 + $0x8] sm:$0xf]
    %v89 = vld [vmem:[#allocation7 + $0xc] sm:$0xf]
    %v90 = vld [vmem:[#allocation7 + $0x10] sm:$0xf]
    %v91 = vld [vmem:[#allocation7 + $0x14] sm:$0xf]
    %v92 = vld [vmem:[#allocation7 + $0x18] sm:$0xf]
    %v93 = vld [vmem:[#allocation7 + $0x1c] sm:$0xf]
    %v94 = vld [vmem:[#allocation7 + $0x20] sm:$0xf]
    %v95 = vld [vmem:[#allocation7 + $0x24] sm:$0xf]
    %v96 = vld [vmem:[#allocation7 + $0x28] sm:$0xf]
    %v97 = vld [vmem:[#allocation7 + $0x2c] sm:$0xf]
    %v98 = vld [vmem:[#allocation7 + $0x30] sm:$0xf]
    %v99 = vld [vmem:[#allocation7 + $0x34] sm:$0xf]
    %v100 = vld [vmem:[#allocation7 + $0x38] sm:$0xf]
    %v101 = vld [vmem:[#allocation7 + $0x3c] sm:$0xf]
    %v118 = vunpack.c.l.b16 %v86
    %v119 = vunpack.c.l.b16 %v87
    %v120 = vunpack.c.l.b16 %v88
    %v121 = vunpack.c.l.b16 %v89
    %v122 = vunpack.c.l.b16 %v90
    %v123 = vunpack.c.l.b16 %v91
    %v124 = vunpack.c.l.b16 %v92
    %v125 = vunpack.c.l.b16 %v93
    %v126 = vunpack.c.l.b16 %v94
    %v127 = vunpack.c.l.b16 %v95
    %v128 = vunpack.c.l.b16 %v96
    %v129 = vunpack.c.l.b16 %v97
    %v130 = vunpack.c.l.b16 %v98
    %v131 = vunpack.c.l.b16 %v99
    %v132 = vunpack.c.l.b16 %v100
    %v133 = vunpack.c.l.b16 %v101
    %v134 = vpack.c.b16 %v119, %v118
    %v135 = vpack.c.b16 %v121, %v120
    %v136 = vpack.c.b16 %v123, %v122
    %v137 = vpack.c.b16 %v125, %v124
    %v138 = vpack.c.b16 %v127, %v126
    %v139 = vpack.c.b16 %v129, %v128
    %v140 = vpack.c.b16 %v131, %v130
    %v141 = vpack.c.b16 %v133, %v132
    %150 = vmatpush.bf16.msra.mxu0 %v141
    %151 = vmatpush.bf16.msra.mxu0 %v140
    %152 = vmatpush.bf16.msra.mxu0 %v139
    %153 = vmatpush.bf16.msra.mxu0 %v138
    %154 = vmatpush.bf16.msra.mxu0 %v137
    %155 = vmatpush.bf16.msra.mxu0 %v136
    %156 = vmatpush.bf16.msra.mxu0 %v135
    %157 = vmatpush.bf16.msra.mxu0 %v134
    %158 = vmatmul.bf16.gmra.mxu0 %v85
    %v159 = vpop.f32.mrf.mxu0
    %v160 = vadd.f32 0.0, %v159
    %v161 = vpop.f32.mrf.mxu0
    %162 = vdwg.mxu0
    %v163 = vpack.c.bf16 %v160, %v160
    %v164 = vld [vmem:[%s3] sm:$0x1]
    %v166 = vperm.slane %v164, 0
    %vm168 = vcmask 64512
    %v170 = vsel %vm168, %v84, 0
    %vm172 = vcmask 1043456
    %v174 = vsel %vm172, %v163, 0
    %176 = vmatpush.bf16.msra.mxu0 0
    %177 = vmatpush.bf16.msra.mxu0 0
    %178 = vmatpush.bf16.msra.mxu0 0
    %179 = vmatpush.bf16.msra.mxu0 0
    %180 = vmatpush.bf16.msra.mxu0 0
    %181 = vmatpush.bf16.msra.mxu0 0
    %182 = vmatpush.bf16.msra.mxu0 0
    %183 = vmatpush.bf16.msra.mxu0 %v174
    %184 = vmatmul.bf16.gmra.mxu0 %v170
    %v185 = vpop.f32.mrf.mxu0
    %v186 = vadd.f32 %v166, %v185
    %v187 = vpop.f32.mrf.mxu0
    %188 = vdwg.mxu0
    %v189 = vmax.f32 %v186, 0.0
    %v190 = vpack.c.bf16 %v189, %v189
    %v191 = vld [vmem:[#allocation8] sm:$0xf]
    %v192 = vld [vmem:[#allocation8 + $0x4] sm:$0xf]
    %v193 = vld [vmem:[#allocation8 + $0x8] sm:$0xf]
    %v194 = vld [vmem:[#allocation8 + $0xc] sm:$0xf]
    %v195 = vld [vmem:[#allocation8 + $0x10] sm:$0xf]
    %v196 = vld [vmem:[#allocation8 + $0x14] sm:$0xf]
    %v197 = vld [vmem:[#allocation8 + $0x18] sm:$0xf]
    %v198 = vld [vmem:[#allocation8 + $0x1c] sm:$0xf]
    %v199 = vld [vmem:[#allocation8 + $0x20] sm:$0xf]
    %v200 = vld [vmem:[#allocation8 + $0x24] sm:$0xf]
    %v201 = vld [vmem:[#allocation8 + $0x28] sm:$0xf]
    %v202 = vld [vmem:[#allocation8 + $0x2c] sm:$0xf]
    %v203 = vld [vmem:[#allocation8 + $0x30] sm:$0xf]
    %v204 = vld [vmem:[#allocation8 + $0x34] sm:$0xf]
    %v205 = vld [vmem:[#allocation8 + $0x38] sm:$0xf]
    %v206 = vld [vmem:[#allocation8 + $0x3c] sm:$0xf]
    %v223 = vunpack.c.l.b16 %v191
    %v224 = vunpack.c.l.b16 %v192
    %v225 = vunpack.c.l.b16 %v193
    %v226 = vunpack.c.l.b16 %v194
    %v227 = vunpack.c.l.b16 %v195
    %v228 = vunpack.c.l.b16 %v196
    %v229 = vunpack.c.l.b16 %v197
    %v230 = vunpack.c.l.b16 %v198
    %v231 = vunpack.c.l.b16 %v199
    %v232 = vunpack.c.l.b16 %v200
    %v233 = vunpack.c.l.b16 %v201
    %v234 = vunpack.c.l.b16 %v202
    %v235 = vunpack.c.l.b16 %v203
    %v236 = vunpack.c.l.b16 %v204
    %v237 = vunpack.c.l.b16 %v205
    %v238 = vunpack.c.l.b16 %v206
    %v239 = vpack.c.b16 %v224, %v223
    %v240 = vpack.c.b16 %v226, %v225
    %v241 = vpack.c.b16 %v228, %v227
    %v242 = vpack.c.b16 %v230, %v229
    %v243 = vpack.c.b16 %v232, %v231
    %v244 = vpack.c.b16 %v234, %v233
    %v245 = vpack.c.b16 %v236, %v235
    %v246 = vpack.c.b16 %v238, %v237
    %255 = vmatpush.bf16.msra.mxu0 %v246
    %256 = vmatpush.bf16.msra.mxu0 %v245
    %257 = vmatpush.bf16.msra.mxu0 %v244
    %258 = vmatpush.bf16.msra.mxu0 %v243
    %259 = vmatpush.bf16.msra.mxu0 %v242
    %260 = vmatpush.bf16.msra.mxu0 %v241
    %261 = vmatpush.bf16.msra.mxu0 %v240
    %262 = vmatpush.bf16.msra.mxu0 %v239
    %263 = vmatmul.bf16.gmra.mxu0 %v190
    %v264 = vpop.f32.mrf.mxu0
    %v265 = vadd.f32 0.0, %v264
    %v266 = vpop.f32.mrf.mxu0
    %267 = vdwg.mxu0
    %v268 = vpack.c.bf16 %v265, %v265
    %v269 = vld [vmem:[%s5] sm:$0x1]
    %v271 = vperm.slane %v269, 0
    %v274 = vsel %vm172, %v268, 0
    %276 = vmatpush.bf16.msra.mxu0 0
    %277 = vmatpush.bf16.msra.mxu0 0
    %278 = vmatpush.bf16.msra.mxu0 0
    %279 = vmatpush.bf16.msra.mxu0 0
    %280 = vmatpush.bf16.msra.mxu0 0
    %281 = vmatpush.bf16.msra.mxu0 0
    %282 = vmatpush.bf16.msra.mxu0 0
    %283 = vmatpush.bf16.msra.mxu0 %v274
    %284 = vmatmul.bf16.gmra.mxu0 %v170
    %v285 = vpop.f32.mrf.mxu0
    %v286 = vadd.f32 %v271, %v285
    %v287 = vpop.f32.mrf.mxu0
    %288 = vdwg.mxu0
    %v289 = vmax.f32 %v286, 0.0
    %v290 = vmax.f32 %v189, %v289
    %291 = vst [vmem:[#allocation10] sm:$0xff] %v290
    // Predicated region
    $region42: #{tpu_custom_call.1} parent=1 // pred_check
      _
    $region43: #{tpu_custom_call.1} parent=1 // pred_check_branch
      %293 = sbr.rel (0) target = $region45
    $region44: #{tpu_custom_call.1} parent=1 // pred_region
      %295 = vsyncadd [#allocation4], 0
      %s297 = sshll.u32 [#allocation10], 4
      %s298 = int_to_ptr.vmem [resolvable:$true] %s297
      %s299 = sshll.u32 %s6, 4
      %s300 = int_to_ptr.hbm [resolvable:$true] %s299
      %302 = dma.vmem_to_hbm [thread:$0]  %s298, 128, %s300, [#allocation4]
    $region45: #{tpu_custom_call.1} parent=1 // pred_fallthru
      _
    // Predicated region
    $region46: #{tpu_custom_call.1} parent=1 // pred_check
      _
    $region47: #{tpu_custom_call.1} parent=1 // pred_check_branch
      %304 = sbr.rel (0) target = $region49
    $region48: #{tpu_custom_call.1} parent=1 // pred_region
      %306 = dma.done [#allocation4], 128
    $region49: #{tpu_custom_call.1} parent=1 // pred_fallthru
      _
    %307 = vsyncpa [#allocation3], 1
    %308 = vsyncpa [#allocation6], 1
    %309 = vsyncpa [#allocation9], 1
    %310 = vsyncpa [#allocation4], 1

</llo_original>
